<compile_context>
chip_gen: v6e
topology: v6e:2x2x1
jax: 0.10.0
libtpu: 0.0.40
codegen_flags: <defaults>
</compile_context>

<pallas_src>
import jax
import jax.numpy as jnp
import numpy as np
from jax.experimental import pallas as pl
from jax.experimental.pallas import tpu as pltpu


def _round_up(x: int, m: int) -> int:
    return ((x + m - 1) // m) * m


def _vmem_capacity_bytes() -> int:
    """Physical VMEM per core (v5e/v6e 128 MiB, v7x 64 MiB); conservative fallback."""
    try:
        info = pltpu.get_tpu_info()
        cap = getattr(info, "vmem_capacity_bytes", None)
        if cap:
            return int(cap)
    except Exception:
        pass
    return 64 * 1024 * 1024


def _pick_tile(Np: int, Bp: int, ts_itemsize: int, tile_n=None) -> int:
    """Column-tile width tn: multiple of 128, divides Np, fits a VMEM budget."""
    if tile_n is not None:
        if tile_n % 128 != 0 or Np % tile_n != 0:
            raise ValueError(f"tile_n={tile_n} must be a multiple of 128 dividing Np={Np}")
        return int(tile_n)
    budget = int(0.6 * _vmem_capacity_bytes())
    resident = 2 * 3 * Bp * Np * 4 + 2 * 8 * Np * 4   # state + params blocks
    t = Np if Np <= 1024 else 512
    while True:
        need = 2 * Np * t * ts_itemsize + 2 * 3 * Bp * t * 4 + resident
        if Np % t == 0 and need <= budget:
            return t
        if t <= 128:
            # TODO(synk): for huge N also tile the contraction (row) dim of ts.
            return 128
        t -= 128


def _nuiv_kernel(sb_ref, p_ref, ts_ref, o_ref):
    """sb_ref: (3, Bp, Np) rows U / I / V         (resident, constant index map)
       p_ref : (8, Np)  rows betas, deltas, cs, ps, kv, 0, 0, 0   (resident)
       ts_ref: (Np, tn) column tile of diag(norm) @ ts_eff        (double-buffered)
       o_ref : (3, Bp, tn) rows dU / dI / dV for this column tile."""
    tn = o_ref.shape[-1]
    col = pl.multiple_of(pl.program_id(0) * tn, 128)

    s_tile = sb_ref[:, :, pl.ds(col, tn)]          # (3, Bp, tn)
    u, ii, v = s_tile[0], s_tile[1], s_tile[2]     # each (Bp, tn)

    p_tile = p_ref[:, pl.ds(col, tn)]              # (8, tn)
    betas = p_tile[0:1]
    deltas = p_tile[1:2]
    cs = p_tile[2:3]
    ps = p_tile[3:4]
    kv = p_tile[4:5]                               # precomputed (1 + norm) * diag(ts)

    # Full V (all hosts) against this column tile of diag(norm) @ ts.
    v_full = sb_ref[2]                             # (Bp, Np); padded lanes/rows are 0
    spread = jnp.dot(v_full.astype(ts_ref.dtype), ts_ref[...],
                     preferred_element_type=jnp.float32)        # (Bp, tn)

    buv = betas * u * v
    o_ref[0] = -buv
    o_ref[1] = buv - deltas * ii
    o_ref[2] = ps * ii - cs * v - kv * v + spread


def make_nuiv_rhs(betas_raw, deltas_raw, cs_raw, ps_raw, ts_raw, *,
                  ts_dtype=jnp.float32, tile_n=None, use_pallas=None):
    """Precompute parameter-only quantities once; return rhs(t, state) closure.

    state may be (3N,) (single trajectory, interleaved [U0, I0, V0, U1, ...]) or
    (B, 3N) for B independent evaluations batched into one kernel call."""
    N = int(betas_raw.shape[0])
    Np = _round_up(max(N, 1), 128)
    if use_pallas is None:
        use_pallas = N >= 128   # tiny N: padding + launch overhead dominate

    # squared_parametrization: effective parameter = raw ** 2
    betas = (betas_raw * betas_raw).astype(jnp.float32)
    deltas = (deltas_raw * deltas_raw).astype(jnp.float32)
    cs = (cs_raw * cs_raw).astype(jnp.float32)
    ps = (ps_raw * ps_raw).astype(jnp.float32)
    ts = (ts_raw * ts_raw).astype(jnp.float32)     # (N, N) effective

    diag = jnp.diag(ts)
    # TODO(synk): matches the torch reference exactly; a host with no off-diagonal
    # connections divides by zero (inf clamps to 1.0; NaN if its diag is also 0).
    norm = jnp.minimum(diag / (jnp.sum(ts, axis=1) - diag), 1.0)
    kv = (1.0 + norm) * diag                       # coefficient of the V self-decay
    ts_scaled = norm[:, None] * ts                 # == diag(norm) @ ts

    def pad_vec(x):
        return jnp.zeros((Np,), jnp.float32).at[:N].set(x)

    zeros_row = jnp.zeros((Np,), jnp.float32)
    params8 = jnp.stack([pad_vec(betas), pad_vec(deltas), pad_vec(cs),
                         pad_vec(ps), pad_vec(kv),
                         zeros_row, zeros_row, zeros_row], axis=0)          # (8, Np)
    ts_pad = (jnp.zeros((Np, Np), jnp.float32)
              .at[:N, :N].set(ts_scaled)).astype(ts_dtype)                  # (Np, Np)
    ts_itemsize = int(np.dtype(ts_dtype).itemsize)

    def _pallas_eval(s3):                          # s3: (3, B, N) float32
        B = s3.shape[1]
        Bp = _round_up(max(B, 1), 8)
        sb = jnp.zeros((3, Bp, Np), jnp.float32).at[:, :B, :N].set(s3)

        tn = _pick_tile(Np, Bp, ts_itemsize, tile_n)
        grid = (Np // tn,)

        need = (2 * Np * tn * ts_itemsize          # ts column tile, double-buffered
                + 3 * Bp * Np * 4 + 8 * Np * 4     # resident state + params
                + 2 * 3 * Bp * tn * 4)             # output tile, double-buffered
        cap = _vmem_capacity_bytes()
        vmem_limit = int(min(0.9 * cap, max(1.5 * need + (4 << 20), 32 << 20)))

        cost = pl.CostEstimate(
            flops=2 * Bp * Np * Np + 12 * Bp * Np,
            transcendentals=0,
            bytes_accessed=Np * Np * ts_itemsize + (2 * 3 * Bp * Np + 8 * Np) * 4,
        )

        call = pl.pallas_call(
            _nuiv_kernel,
            out_shape=jax.ShapeDtypeStruct((3, Bp, Np), jnp.float32),
            grid=grid,
            in_specs=[
                pl.BlockSpec((3, Bp, Np), lambda j: (0, 0, 0)),   # state: resident
                pl.BlockSpec((8, Np), lambda j: (0, 0)),          # params: resident
                pl.BlockSpec((Np, tn), lambda j: (0, j)),         # ts column tile
            ],
            out_specs=pl.BlockSpec((3, Bp, tn), lambda j: (0, 0, j)),
            compiler_params=pltpu.CompilerParams(
                dimension_semantics=("parallel",),                # megacore on v7x
                vmem_limit_bytes=vmem_limit),
            cost_estimate=cost,
        )
        out = call(sb, params8, ts_pad)
        return out[:, :B, :N]

    def _xla_eval(s3):                             # fused pure-XLA path for tiny N
        U, I, V = s3[0], s3[1], s3[2]
        buv = betas * U * V
        dU = -buv
        dI = buv - deltas * I
        dV = ps * I - cs * V - kv * V + jnp.matmul(V, ts_scaled)
        return jnp.stack([dU, dI, dV], axis=0)

    def rhs(t, state):
        del t  # autonomous ODE
        single = state.ndim == 1
        st = (state[None, :] if single else state).astype(jnp.float32)
        B = st.shape[0]
        s3 = jnp.transpose(st.reshape(B, N, 3), (2, 0, 1))       # (3, B, N): U, I, V
        d3 = _pallas_eval(s3) if use_pallas else _xla_eval(s3)
        out = jnp.transpose(d3, (1, 2, 0)).reshape(B, 3 * N)     # re-interleave
        return out[0] if single else out

    return rhs


def nuiv_rhs(t, state, betas_raw, deltas_raw, cs_raw, ps_raw, ts_raw, **kw):
    """One-shot convenience wrapper (prefer make_nuiv_rhs(...) once per ODE solve)."""
    return make_nuiv_rhs(betas_raw, deltas_raw, cs_raw, ps_raw, ts_raw, **kw)(t, state)


def nuiv_rhs_ref(t, state, betas_raw, deltas_raw, cs_raw, ps_raw, ts_raw):
    """Plain-JAX reference mirroring the PyTorch forward."""
    del t
    betas, deltas, cs, ps = (x * x for x in (betas_raw, deltas_raw, cs_raw, ps_raw))
    ts = ts_raw * ts_raw
    diag = jnp.diag(ts)
    norm = jnp.minimum(diag / (jnp.sum(ts, axis=1) - diag), 1.0)
    U, I, V = state[::3], state[1::3], state[2::3]
    rhs_u = -betas * U * V
    rhs_i = betas * U * V - deltas * I
    rhs_v = (ps * I - cs * V - (1.0 + norm) * diag * V
             + jnp.matmul(V, jnp.matmul(jnp.diag(norm), ts)))
    rhs = jnp.zeros_like(state)
    return rhs.at[::3].set(rhs_u).at[1::3].set(rhs_i).at[2::3].set(rhs_v)


if __name__ == "__main__":
    def build_params(N, key):
        kb, kd, kc, kp, kt = jax.random.split(key, 5)
        # __init__ draws the *effective* values ~ U[0,1); raw = sqrt(eff) so that
        # effective = raw**2 reproduces the torch parametrization semantics.
        betas_raw = jnp.sqrt(jax.random.uniform(kb, (N,), jnp.float32))
        deltas_raw = jnp.sqrt(jax.random.uniform(kd, (N,), jnp.float32))
        cs_raw = jnp.sqrt(jax.random.uniform(kc, (N,), jnp.float32))
        ps_raw = jnp.sqrt(jax.random.uniform(kp, (N,), jnp.float32))
        ts_eff = (jnp.eye(N, dtype=jnp.float32)
                  + jax.random.uniform(kt, (N, N), jnp.float32)) / 2.0
        ts_raw = jnp.sqrt(ts_eff)
        return betas_raw, deltas_raw, cs_raw, ps_raw, ts_raw

    key = jax.random.PRNGKey(0)
    k1, k2, ks1, ks2 = jax.random.split(key, 4)

    # Case 1: single state, N=16 (Np=128, single column tile).
    N = 16
    prm = build_params(N, k1)
    state = jax.random.uniform(ks1, (3 * N,), jnp.float32)
    rhs_fn = make_nuiv_rhs(*prm, use_pallas=True)   # force the kernel for the demo
    out = jax.block_until_ready(rhs_fn(jnp.float32(0.0), state))
    ref = nuiv_rhs_ref(0.0, state, *prm)
    np.testing.assert_allclose(np.asarray(out), np.asarray(ref), rtol=5e-5, atol=1e-5)

    # Case 2: batch of 4 states, N=160 (Np=256), tile_n=128 -> 2-step column grid.
    N2, B = 160, 4
    prm2 = build_params(N2, k2)
    states = jax.random.uniform(ks2, (B, 3 * N2), jnp.float32)
    rhs_fn2 = make_nuiv_rhs(*prm2, use_pallas=True, tile_n=128)
    out2 = jax.block_until_ready(rhs_fn2(jnp.float32(0.0), states))
    ref2 = jax.vmap(lambda s: nuiv_rhs_ref(0.0, s, *prm2))(states)
    np.testing.assert_allclose(np.asarray(out2), np.asarray(ref2), rtol=5e-5, atol=1e-5)

    print("KERNEL_OK")
</pallas_src>

<mosaic_0001>
module attributes {stable_mosaic.version = 11 : i64} {
  func.func @_nuiv_kernel(%arg0: i32, %arg1: memref<3x8x128xf32, #tpu.memory_space<vmem>>, %arg2: memref<8x128xf32, #tpu.memory_space<vmem>>, %arg3: memref<128x128xf32, #tpu.memory_space<vmem>>, %arg4: memref<3x8x128xf32, #tpu.memory_space<vmem>>) attributes {dimension_semantics = [#tpu.dimension_semantics<parallel>], iteration_bounds = array<i64: 1>, scalar_prefetch = 0 : i64, scratch_operands = 0 : i64, tpu.core_type = #tpu.core_type<tc>, window_params = [{pipeline_mode = #tpu.pipeline_mode<synchronous>, transform_indices = @transform_0, window_bounds = array<i64: 3, 8, 128>}, {pipeline_mode = #tpu.pipeline_mode<synchronous>, transform_indices = @transform_1, window_bounds = array<i64: 8, 128>}, {transform_indices = @transform_2, window_bounds = array<i64: 128, 128>}, {transform_indices = @transform_3, window_bounds = array<i64: 3, 8, 128>}]} {
    %c128_i32 = arith.constant 128 : i32
    %0 = arith.muli %arg0, %c128_i32 : i32
    %1 = tpu.assume_multiple %0, 128 : i32
    %c0 = arith.constant 0 : index
    %c0_0 = arith.constant 0 : index
    %2 = arith.index_cast %1 : i32 to index
    %3 = vector.load %arg1[%c0, %c0_0, %2] : memref<3x8x128xf32, #tpu.memory_space<vmem>>, vector<3x8x128xf32>
    %4 = vector.extract_strided_slice %3 {offsets = [0, 0, 0], sizes = [1, 8, 128], strides = [1, 1, 1]} : vector<3x8x128xf32> to vector<1x8x128xf32>
    %5 = vector.shape_cast %4 : vector<1x8x128xf32> to vector<8x128xf32>
    %6 = vector.extract_strided_slice %3 {offsets = [1, 0, 0], sizes = [1, 8, 128], strides = [1, 1, 1]} : vector<3x8x128xf32> to vector<1x8x128xf32>
    %7 = vector.shape_cast %6 : vector<1x8x128xf32> to vector<8x128xf32>
    %8 = vector.extract_strided_slice %3 {offsets = [2, 0, 0], sizes = [1, 8, 128], strides = [1, 1, 1]} : vector<3x8x128xf32> to vector<1x8x128xf32>
    %9 = vector.shape_cast %8 : vector<1x8x128xf32> to vector<8x128xf32>
    %c0_1 = arith.constant 0 : index
    %10 = arith.index_cast %1 : i32 to index
    %11 = vector.load %arg2[%c0_1, %10] : memref<8x128xf32, #tpu.memory_space<vmem>>, vector<8x128xf32>
    %12 = vector.extract_strided_slice %11 {offsets = [0, 0], sizes = [1, 128], strides = [1, 1]} : vector<8x128xf32> to vector<1x128xf32>
    %13 = vector.extract_strided_slice %11 {offsets = [1, 0], sizes = [1, 128], strides = [1, 1]} : vector<8x128xf32> to vector<1x128xf32>
    %14 = vector.extract_strided_slice %11 {offsets = [2, 0], sizes = [1, 128], strides = [1, 1]} : vector<8x128xf32> to vector<1x128xf32>
    %15 = vector.extract_strided_slice %11 {offsets = [3, 0], sizes = [1, 128], strides = [1, 1]} : vector<8x128xf32> to vector<1x128xf32>
    %16 = vector.extract_strided_slice %11 {offsets = [4, 0], sizes = [1, 128], strides = [1, 1]} : vector<8x128xf32> to vector<1x128xf32>
    %c2 = arith.constant 2 : index
    %c0_2 = arith.constant 0 : index
    %c0_3 = arith.constant 0 : index
    %17 = vector.load %arg1[%c2, %c0_2, %c0_3] : memref<3x8x128xf32, #tpu.memory_space<vmem>>, vector<1x8x128xf32>
    %18 = vector.shape_cast %17 : vector<1x8x128xf32> to vector<8x128xf32>
    %c0_4 = arith.constant 0 : index
    %c0_5 = arith.constant 0 : index
    %19 = vector.load %arg3[%c0_4, %c0_5] : memref<128x128xf32, #tpu.memory_space<vmem>>, vector<128x128xf32>
    %cst = arith.constant dense<0.000000e+00> : vector<8x128xf32>
    %20 = tpu.matmul %18, %19, %cst {dimension_numbers = #tpu.dot_dimension_numbers<[1], [0], [0], [1], [0, 0, 1, 1], [], []>} : vector<8x128xf32>, vector<128x128xf32>, vector<8x128xf32> -> vector<8x128xf32>
    %21 = vector.broadcast %12 : vector<1x128xf32> to vector<8x128xf32>
    %22 = arith.mulf %21, %5 : vector<8x128xf32>
    %23 = arith.mulf %22, %9 : vector<8x128xf32>
    %cst_6 = arith.constant 0.000000e+00 : f32
    %24 = vector.broadcast %cst_6 : f32 to vector<8x128xf32>
    %25 = arith.subf %24, %23 : vector<8x128xf32>
    %c0_7 = arith.constant 0 : index
    %c0_8 = arith.constant 0 : index
    %c0_9 = arith.constant 0 : index
    %26 = vector.load %arg4[%c0_7, %c0_8, %c0_9] : memref<3x8x128xf32, #tpu.memory_space<vmem>>, vector<1x8x128xf32>
    %27 = vector.shape_cast %26 : vector<1x8x128xf32> to vector<8x128xf32>
    %28 = vector.shape_cast %25 : vector<8x128xf32> to vector<1x8x128xf32>
    tpu.vector_store %arg4[%c0_7, %c0_8, %c0_9], %28 {strides = array<i32>} : memref<3x8x128xf32, #tpu.memory_space<vmem>>, vector<1x8x128xf32>,
    %29 = vector.broadcast %13 : vector<1x128xf32> to vector<8x128xf32>
    %30 = arith.mulf %29, %7 : vector<8x128xf32>
    %31 = arith.subf %23, %30 : vector<8x128xf32>
    %c1 = arith.constant 1 : index
    %c0_10 = arith.constant 0 : index
    %c0_11 = arith.constant 0 : index
    %32 = vector.load %arg4[%c1, %c0_10, %c0_11] : memref<3x8x128xf32, #tpu.memory_space<vmem>>, vector<1x8x128xf32>
    %33 = vector.shape_cast %32 : vector<1x8x128xf32> to vector<8x128xf32>
    %34 = vector.shape_cast %31 : vector<8x128xf32> to vector<1x8x128xf32>
    tpu.vector_store %arg4[%c1, %c0_10, %c0_11], %34 {strides = array<i32>} : memref<3x8x128xf32, #tpu.memory_space<vmem>>, vector<1x8x128xf32>,
    %35 = vector.broadcast %15 : vector<1x128xf32> to vector<8x128xf32>
    %36 = arith.mulf %35, %7 : vector<8x128xf32>
    %37 = vector.broadcast %14 : vector<1x128xf32> to vector<8x128xf32>
    %38 = arith.mulf %37, %9 : vector<8x128xf32>
    %39 = arith.subf %36, %38 : vector<8x128xf32>
    %40 = vector.broadcast %16 : vector<1x128xf32> to vector<8x128xf32>
    %41 = arith.mulf %40, %9 : vector<8x128xf32>
    %42 = arith.subf %39, %41 : vector<8x128xf32>
    %43 = arith.addf %42, %20 : vector<8x128xf32>
    %c2_12 = arith.constant 2 : index
    %c0_13 = arith.constant 0 : index
    %c0_14 = arith.constant 0 : index
    %44 = vector.load %arg4[%c2_12, %c0_13, %c0_14] : memref<3x8x128xf32, #tpu.memory_space<vmem>>, vector<1x8x128xf32>
    %45 = vector.shape_cast %44 : vector<1x8x128xf32> to vector<8x128xf32>
    %46 = vector.shape_cast %43 : vector<8x128xf32> to vector<1x8x128xf32>
    tpu.vector_store %arg4[%c2_12, %c0_13, %c0_14], %46 {strides = array<i32>} : memref<3x8x128xf32, #tpu.memory_space<vmem>>, vector<1x8x128xf32>,
    return
  }
  func.func @transform_0(%arg0: i32) -> (i32, i32, i32) {
    %c0_i32 = arith.constant 0 : i32
    %c0_i32_0 = arith.constant 0 : i32
    %c0_i32_1 = arith.constant 0 : i32
    %c0_i32_2 = arith.constant 0 : i32
    return %c0_i32, %c0_i32_0, %c0_i32_1 : i32, i32, i32
  }
  func.func @transform_1(%arg0: i32) -> (i32, i32) {
    %c0_i32 = arith.constant 0 : i32
    %c0_i32_0 = arith.constant 0 : i32
    %c0_i32_1 = arith.constant 0 : i32
    return %c0_i32, %c0_i32_0 : i32, i32
  }
  func.func @transform_2(%arg0: i32) -> (i32, i32) {
    %c0_i32 = arith.constant 0 : i32
    %c0_i32_0 = arith.constant 0 : i32
    return %c0_i32, %arg0 : i32, i32
  }
  func.func @transform_3(%arg0: i32) -> (i32, i32, i32) {
    %c0_i32 = arith.constant 0 : i32
    %c0_i32_0 = arith.constant 0 : i32
    %c0_i32_1 = arith.constant 0 : i32
    return %c0_i32, %c0_i32_0, %arg0 : i32, i32, i32
  }
}

</mosaic_0001>

<llo_original>
// kernel: tpu_custom_call.1
$region0: #{tpu_custom_call.1}
  #allocation0 [shape = 'u32[]', space=smem, size = 0x4, offset = 0x4, fixed_abs, tag = 'smem constant byte address 0x4 - core index']
  #allocation1 [shape = 'u32[144,128]{1,0:T(1,128)}', space=vmem, size = 0x12000, scoped, tag = 'internal scratch']
  %s0 = inlined_call_operand.hbm [shape: f32[3,8,128], index: 0, kind: input, shape index: {}]
  %s1 = inlined_call_operand.hbm [shape: f32[8,128], index: 1, kind: input, shape index: {}]
  %s2 = inlined_call_operand.hbm [shape: f32[128,128], index: 2, kind: input, shape index: {}]
  %s3 = inlined_call_operand.hbm [shape: f32[3,8,128], index: 3, kind: output, shape index: {}]
  %s4 = sld [smem:[#allocation0]]
  $region34: #{tpu_custom_call.1} parent=0
    _
  %s6 = ssub.s32 1, %s4
  %s7 = scalar_select 0, %s6, %s4
  $region1: #{tpu_custom_call.1} parent=0
    #allocation2 [shape = 'u8[12288]{0}', space=vmem, size = 0x3000, scoped, tag = 'input window, operand 0, single buffered']
    #allocation3 [shape = 's32[1]{0}', space=sflag, size = 0x4, scoped, tag = 'scoped memory for tpu_custom_call.1']
    #allocation4 [shape = 's32[1]{0}', space=sflag, size = 0x4, scoped, tag = 'scoped memory for tpu_custom_call.1']
    #allocation5 [shape = 'u8[4096]{0}', space=vmem, size = 0x1000, scoped, tag = 'input window, operand 1, single buffered']
    #allocation6 [shape = 's32[1]{0}', space=sflag, size = 0x4, scoped, tag = 'scoped memory for tpu_custom_call.1']
    #allocation7 [shape = 'u8[65536]{0}', space=vmem, size = 0x10000, scoped, tag = 'input window, operand 2, single buffered']
    #allocation8 [shape = 'u8[12288]{0}', space=vmem, size = 0x3000, scoped, tag = 'output window, operand 0, single buffered']
    %8 = vsyncpa [#allocation3], 0
    %9 = vsyncpa [#allocation6], 0
    %10 = vsyncpa [#allocation4], 0
    // Predicated region
    $region2: #{tpu_custom_call.1} parent=1 // pred_check
      _
    $region3: #{tpu_custom_call.1} parent=1 // pred_check_branch
      %12 = sbr.rel (0) target = $region5
    $region4: #{tpu_custom_call.1} parent=1 // pred_region
      %s14 = ssub.s32 384, 384
      %15 = vsyncadd [#allocation3], %s14
      %s16 = sshll.u32 [#allocation2], 4
      %s17 = int_to_ptr.vmem [resolvable:$true] %s16
      %22 = dma.hbm_to_vmem [thread:$0]  %s0, 384, %s17, [#allocation3], 128, 128, 8
    $region5: #{tpu_custom_call.1} parent=1 // pred_fallthru
      _
    // Predicated region
    $region6: #{tpu_custom_call.1} parent=1 // pred_check
      _
    $region7: #{tpu_custom_call.1} parent=1 // pred_check_branch
      %24 = sbr.rel (0) target = $region9
    $region8: #{tpu_custom_call.1} parent=1 // pred_region
      %s26 = ssub.s32 128, 128
      %27 = vsyncadd [#allocation6], %s26
      %s29 = sshll.u32 [#allocation5], 4
      %s30 = int_to_ptr.vmem [resolvable:$true] %s29
      %32 = dma.hbm_to_vmem [thread:$0]  %s1, 128, %s30, [#allocation6]
    $region9: #{tpu_custom_call.1} parent=1 // pred_fallthru
      _
    // Predicated region
    $region10: #{tpu_custom_call.1} parent=1 // pred_check
      _
    $region11: #{tpu_custom_call.1} parent=1 // pred_check_branch
      %34 = sbr.rel (0) target = $region13
    $region12: #{tpu_custom_call.1} parent=1 // pred_region
      %s36 = ssub.s32 2048, 2048
      %37 = vsyncadd [#allocation6], %s36
      %s38 = sshll.u32 [#allocation7], 4
      %s39 = int_to_ptr.vmem [resolvable:$true] %s38
      %44 = dma.hbm_to_vmem [thread:$0]  %s2, 2048, %s39, [#allocation6], 128, 128, 8
    $region13: #{tpu_custom_call.1} parent=1 // pred_fallthru
      _
    // Predicated region
    $region14: #{tpu_custom_call.1} parent=1 // pred_check
      _
    $region15: #{tpu_custom_call.1} parent=1 // pred_check_branch
      %46 = sbr.rel (0) target = $region17
    $region16: #{tpu_custom_call.1} parent=1 // pred_region
      %47 = dma.done [#allocation3], 384
    $region17: #{tpu_custom_call.1} parent=1 // pred_fallthru
      _
    // Predicated region
    $region18: #{tpu_custom_call.1} parent=1 // pred_check
      _
    $region19: #{tpu_custom_call.1} parent=1 // pred_check_branch
      %49 = sbr.rel (0) target = $region21
    $region20: #{tpu_custom_call.1} parent=1 // pred_region
      %50 = dma.done [#allocation6], 128
    $region21: #{tpu_custom_call.1} parent=1 // pred_fallthru
      _
    // Predicated region
    $region22: #{tpu_custom_call.1} parent=1 // pred_check
      _
    $region23: #{tpu_custom_call.1} parent=1 // pred_check_branch
      %52 = sbr.rel (0) target = $region25
    $region24: #{tpu_custom_call.1} parent=1 // pred_region
      %53 = dma.done [#allocation6], 2048
    $region25: #{tpu_custom_call.1} parent=1 // pred_fallthru
      _
    %s54 = smul.u32 0, 128
    %s55 = sshra.s32 %s54, 7
    %s56 = sand.u32 %s54, 127
    %s57 = scalar_lea.vmem [#allocation2], %s55
    %v58 = vld [vmem:[%s57] sm:$0xff]
    %v59 = vld [vmem:[%s57 + $0x8] sm:$0xff]
    %v60 = vld [vmem:[%s57 + $0x10] sm:$0xff]
    %s61 = scalar_lea.vmem [#allocation5], %s55
    %v62 = vld [vmem:[%s61] sm:$0xff]
    %s63 = scalar_lea.vmem [#allocation2], 16
    %v64 = vld [vmem:[%s63] sm:$0xff]
    %v65 = vld [vmem:[#allocation7] sm:$0xff]
    %v66 = vld [vmem:[#allocation7 + $0x8] sm:$0xff]
    %v67 = vld [vmem:[#allocation7 + $0x10] sm:$0xff]
    %v68 = vld [vmem:[#allocation7 + $0x18] sm:$0xff]
    %v69 = vld [vmem:[#allocation7 + $0x20] sm:$0xff]
    %v70 = vld [vmem:[#allocation7 + $0x28] sm:$0xff]
    %v71 = vld [vmem:[#allocation7 + $0x30] sm:$0xff]
    %v72 = vld [vmem:[#allocation7 + $0x38] sm:$0xff]
    %v73 = vld [vmem:[#allocation7 + $0x40] sm:$0xff]
    %v74 = vld [vmem:[#allocation7 + $0x48] sm:$0xff]
    %v75 = vld [vmem:[#allocation7 + $0x50] sm:$0xff]
    %v76 = vld [vmem:[#allocation7 + $0x58] sm:$0xff]
    %v77 = vld [vmem:[#allocation7 + $0x60] sm:$0xff]
    %v78 = vld [vmem:[#allocation7 + $0x68] sm:$0xff]
    %v79 = vld [vmem:[#allocation7 + $0x70] sm:$0xff]
    %v80 = vld [vmem:[#allocation7 + $0x78] sm:$0xff]
    %81 = vmatprep.subr.mxu0 0.0
    %82 = vmatpush1.msra.mxu0 %v80
    %83 = vmatprep.subr.mxu0 0.0
    %84 = vmatpush1.msra.mxu0 %v79
    %85 = vmatprep.subr.mxu0 0.0
    %86 = vmatpush1.msra.mxu0 %v78
    %87 = vmatprep.subr.mxu0 0.0
    %88 = vmatpush1.msra.mxu0 %v77
    %89 = vmatprep.subr.mxu0 0.0
    %90 = vmatpush1.msra.mxu0 %v76
    %91 = vmatprep.subr.mxu0 0.0
    %92 = vmatpush1.msra.mxu0 %v75
    %93 = vmatprep.subr.mxu0 0.0
    %94 = vmatpush1.msra.mxu0 %v74
    %95 = vmatprep.subr.mxu0 0.0
    %96 = vmatpush1.msra.mxu0 %v73
    %97 = vmatprep.subr.mxu0 0.0
    %98 = vmatpush1.msra.mxu0 %v72
    %99 = vmatprep.subr.mxu0 0.0
    %100 = vmatpush1.msra.mxu0 %v71
    %101 = vmatprep.subr.mxu0 0.0
    %102 = vmatpush1.msra.mxu0 %v70
    %103 = vmatprep.subr.mxu0 0.0
    %104 = vmatpush1.msra.mxu0 %v69
    %105 = vmatprep.subr.mxu0 0.0
    %106 = vmatpush1.msra.mxu0 %v68
    %107 = vmatprep.subr.mxu0 0.0
    %108 = vmatpush1.msra.mxu0 %v67
    %109 = vmatprep.subr.mxu0 0.0
    %110 = vmatpush1.msra.mxu0 %v66
    %111 = vmatprep.subr.mxu0 0.0
    %112 = vmatpush1.msra.mxu0 %v65
    %113 = vmatprep.subr.mxu0 0.0
    %114 = vmatpush2.msra.mxu0 0.0
    %115 = vmatprep.subr.mxu0 0.0
    %116 = vmatpush2.msra.mxu0 0.0
    %117 = vmatprep.subr.mxu0 0.0
    %118 = vmatpush2.msra.mxu0 0.0
    %119 = vmatprep.subr.mxu0 0.0
    %120 = vmatpush2.msra.mxu0 0.0
    %121 = vmatprep.subr.mxu0 0.0
    %122 = vmatpush2.msra.mxu0 0.0
    %123 = vmatprep.subr.mxu0 0.0
    %124 = vmatpush2.msra.mxu0 0.0
    %125 = vmatprep.subr.mxu0 0.0
    %126 = vmatpush2.msra.mxu0 0.0
    %127 = vmatprep.subr.mxu0 0.0
    %128 = vmatpush2.msra.mxu0 0.0
    %129 = vmatprep.subr.mxu0 0.0
    %130 = vmatpush2.msra.mxu0 0.0
    %131 = vmatprep.subr.mxu0 0.0
    %132 = vmatpush2.msra.mxu0 0.0
    %133 = vmatprep.subr.mxu0 0.0
    %134 = vmatpush2.msra.mxu0 0.0
    %135 = vmatprep.subr.mxu0 0.0
    %136 = vmatpush2.msra.mxu0 0.0
    %137 = vmatprep.subr.mxu0 0.0
    %138 = vmatpush2.msra.mxu0 0.0
    %139 = vmatprep.subr.mxu0 0.0
    %140 = vmatpush2.msra.mxu0 0.0
    %141 = vmatprep.subr.mxu0 0.0
    %142 = vmatpush2.msra.mxu0 0.0
    %143 = vmatprep.subr.mxu0 0.0
    %144 = vmatpush2.msra.mxu0 0.0
    %145 = vmatprep.mubr.f32.mxu0 0.0
    %146 = vmatmul.mubr.f32.gmra.mxu0 %v64
    %v147 = vpop.f32.mrf.mxu0
    %v148 = vadd.f32 0.0, %v147
    %v149 = vpop.f32.mrf.mxu0
    %150 = vdwg.mxu0
    %v151 = vlaneseq
    %v152 = vshrl.u32 %v151, 7
    %v153 = vsub.s32 0, %v152
    %v154 = vrot.slane %v62, %v153
    %v155 = vmul.f32 %v154, %v58
    %v156 = vmul.f32 %v155, %v60
    %v157 = vsub.f32 0.0, %v156
    %158 = vst [vmem:[#allocation8] sm:$0xff] %v157
    %v159 = vlaneseq
    %v160 = vshrl.u32 %v159, 7
    %v161 = vsub.s32 1, %v160
    %v162 = vrot.slane %v62, %v161
    %v163 = vmul.f32 %v162, %v59
    %v164 = vsub.f32 %v156, %v163
    %s165 = scalar_lea.vmem [#allocation8], 8
    %166 = vst [vmem:[%s165] sm:$0xff] %v164
    %v167 = vlaneseq
    %v168 = vshrl.u32 %v167, 7
    %v169 = vsub.s32 3, %v168
    %v170 = vrot.slane %v62, %v169
    %v171 = vmul.f32 %v170, %v59
    %v172 = vlaneseq
    %v173 = vshrl.u32 %v172, 7
    %v174 = vsub.s32 2, %v173
    %v175 = vrot.slane %v62, %v174
    %v176 = vmul.f32 %v175, %v60
    %v177 = vsub.f32 %v171, %v176
    %v178 = vlaneseq
    %v179 = vshrl.u32 %v178, 7
    %v180 = vsub.s32 4, %v179
    %v181 = vrot.slane %v62, %v180
    %v182 = vmul.f32 %v181, %v60
    %v183 = vsub.f32 %v177, %v182
    %v184 = vadd.f32 %v183, %v148
    %s185 = scalar_lea.vmem [#allocation8], 16
    %186 = vst [vmem:[%s185] sm:$0xff] %v184
    // Predicated region
    $region26: #{tpu_custom_call.1} parent=1 // pred_check
      _
    $region27: #{tpu_custom_call.1} parent=1 // pred_check_branch
      %188 = sbr.rel (0) target = $region29
    $region28: #{tpu_custom_call.1} parent=1 // pred_region
      %s190 = ssub.s32 384, 384
      %191 = vsyncadd [#allocation4], %s190
      %s192 = sshll.u32 [#allocation8], 4
      %s193 = int_to_ptr.vmem [resolvable:$true] %s192
      %198 = dma.vmem_to_hbm [thread:$0]  %s193, 384, %s3, [#allocation4], 128, 128, 8
    $region29: #{tpu_custom_call.1} parent=1 // pred_fallthru
      _
    // Predicated region
    $region30: #{tpu_custom_call.1} parent=1 // pred_check
      _
    $region31: #{tpu_custom_call.1} parent=1 // pred_check_branch
      %200 = sbr.rel (0) target = $region33
    $region32: #{tpu_custom_call.1} parent=1 // pred_region
      %201 = dma.done [#allocation4], 384
    $region33: #{tpu_custom_call.1} parent=1 // pred_fallthru
      _
    %202 = vsyncpa [#allocation3], 1
    %203 = vsyncpa [#allocation6], 1
    %204 = vsyncpa [#allocation4], 1

</llo_original>
